<compile_context>
chip_gen: v5e
topology: v5e:2x2
jax: 0.10.0
libtpu: 0.0.40
codegen_flags: <defaults>
</compile_context>

<pallas_src>
import functools

import jax
import jax.numpy as jnp
from jax.experimental import pallas as pl
from jax.experimental.pallas import tpu as pltpu


# --------------------------------------------------------------------------- #
# Hardware-aware knobs
# --------------------------------------------------------------------------- #
def _vmem_budget_bytes():
    """Generation-aware scoped-VMEM budget (always leaves compiler headroom)."""
    try:
        cap = int(pltpu.get_tpu_info().vmem_capacity_bytes)
    except Exception:
        cap = 64 << 20                      # unknown -> assume smallest (v7x)
    if cap <= (64 << 20):
        return 46 << 20                     # v7x: 64 MiB/TC, keep ~18 MiB free
    return 100 << 20                        # v5e / v6e: 128 MiB physical


def _choose_block_b(B, S, D_in, D_out, in_item, out_item, has_mask,
                    vmem_budget, weight_bytes):
    """Pick TB = number of sets (batch elements) per grid step.

    Targets ~2 MiB of x per step (mem-bound roofline sweet spot, amortizes the
    ~0.35us per-step overhead), capped by the VMEM budget (streamed tiles are
    double-buffered) and by >= 2 grid steps when B >= 2 (v7x has 2 TCs).
    """
    per_set = S * (D_in * in_item + D_out * out_item + (4 if has_mask else 0))
    per_set_buffered = 2 * per_set                        # double buffering
    avail = max(vmem_budget - weight_bytes - (4 << 20), per_set_buffered)
    tb_vmem = max(1, int(avail // per_set_buffered))
    tb_target = max(1, int((2 << 20) // max(1, S * D_in * in_item)))
    tb_rows = max(1, 8192 // max(1, S))                   # cap flattened rows
    tb = max(1, min(tb_vmem, tb_target, tb_rows, B))
    if B >= 2:                                            # >= 2 steps for v7x
        tb = min(tb, -(-B // 2))
    steps = -(-B // tb)                                   # balance block sizes
    tb = -(-B // steps)
    return int(tb)


# --------------------------------------------------------------------------- #
# Kernels
# --------------------------------------------------------------------------- #
def _equivariant_kernel_nomask(x_ref, w1_ref, b1_ref, w2_ref, b2_ref, o_ref, *,
                               inv_s, mm_dtype):
    # x_ref: (TB, S, D_in); w*: (D_in, D_out); b*: (1, D_out); o: (TB, S, D_out)
    TB, S, D_in = x_ref.shape
    D_out = w1_ref.shape[1]

    x3 = x_ref[...]                                       # native dtype load
    x2 = x3.astype(mm_dtype).reshape(TB * S, D_in)        # in-kernel cast only

    # y1 = l1(x): one lane-dense (TB*S, D_in) @ (D_in, D_out) MXU matmul.
    y1 = jnp.dot(x2, w1_ref[...], preferred_element_type=jnp.float32)
    y1 = (y1 + b1_ref[...]).reshape(TB, S, D_out)

    # y2 = l2(x.sum(-2)): per-set sums -> (TB, D_in) @ (D_in, D_out).
    xs = jnp.sum(x3, axis=1).astype(mm_dtype)             # sum in x's precision
    y2 = jnp.dot(xs, w2_ref[...], preferred_element_type=jnp.float32) + b2_ref[...]

    # out = y1 + y2 / S  (1/S folded in as a compile-time constant).
    o_ref[...] = (y1 + (y2 * inv_s)[:, None, :]).astype(o_ref.dtype)


def _equivariant_kernel_masked(x_ref, m_ref, w1_ref, b1_ref, w2_ref, b2_ref,
                               o_ref, *, mm_dtype):
    # x_ref: (TB, S, D_in); m_ref: (TB, S, 1) f32
    TB, S, D_in = x_ref.shape
    D_out = w1_ref.shape[1]

    x3 = x_ref[...]
    m = m_ref[...]                                        # (TB, S, 1)
    x2 = x3.astype(mm_dtype).reshape(TB * S, D_in)

    y1 = jnp.dot(x2, w1_ref[...], preferred_element_type=jnp.float32)
    y1 = (y1 + b1_ref[...]).reshape(TB, S, D_out)

    xs = jnp.sum(x3, axis=1).astype(mm_dtype)             # (TB, D_in)
    y2 = jnp.dot(xs, w2_ref[...], preferred_element_type=jnp.float32) + b2_ref[...]

    # In-kernel mask reduction (XLU) + exact divide (preserves reference
    # numerics incl. all-zero-mask -> NaN).  out = m * (y1 + y2 / msum).
    msum = jnp.sum(m, axis=1, keepdims=True)              # (TB, 1, 1)
    y2s = y2[:, None, :] / msum                           # (TB, 1, D_out)
    o_ref[...] = (m * (y1 + y2s)).astype(o_ref.dtype)


# --------------------------------------------------------------------------- #
# Wrapper
# --------------------------------------------------------------------------- #
def equivariant_layer(x, w1, b1, w2, b2, mask=None, *, use_bf16_matmul=False,
                      block_b=None):
    """Pallas implementation of EquivariantLayer.forward.

    x:     (B, S, D_in)
    w1/w2: (D_in, D_out)   (already transposed from torch's (out, in))
    b1/b2: (D_out,)
    mask:  optional (B, S, K) -- only mask[..., 0] is used (as in the module).
           Precondition (same as PyTorch): mask.sum > 0 per set, else NaN/inf.
    """
    B, S, D_in = x.shape
    D_out = w1.shape[1]
    out_dtype = x.dtype
    has_mask = mask is not None

    # Matmul precision: optionally bf16 (f32 accumulation).  x is NOT cast in
    # the wrapper (would be a full extra HBM pass); it is cast in-kernel.
    mm_dtype = jnp.bfloat16 if use_bf16_matmul else x.dtype
    w1c = w1.astype(mm_dtype)
    w2c = w2.astype(mm_dtype)
    b1_2d = b1.reshape(1, D_out).astype(jnp.float32)
    b2_2d = b2.reshape(1, D_out).astype(jnp.float32)

    in_item = jnp.dtype(x.dtype).itemsize
    out_item = jnp.dtype(out_dtype).itemsize
    w_item = jnp.dtype(mm_dtype).itemsize

    # Resident weights: single-buffer only when large enough to matter (v7x).
    weight_bytes_each = D_in * D_out * w_item
    single_buffer_w = weight_bytes_each >= (1 << 20)
    w_bufs = 1 if single_buffer_w else 2
    weight_bytes = 2 * w_bufs * weight_bytes_each + 2 * 2 * D_out * 4

    vmem_budget = _vmem_budget_bytes()
    TB = block_b if block_b is not None else _choose_block_b(
        B, S, D_in, D_out, in_item, out_item, has_mask, vmem_budget,
        weight_bytes)
    TB = int(max(1, min(TB, B)))
    grid = (pl.cdiv(B, TB),)                      # no divisibility requirement

    # BlockSpecs: true D_out width everywhere (block last dims == array dims).
    x_spec = pl.BlockSpec((TB, S, D_in), lambda b: (b, 0, 0))
    out_spec = pl.BlockSpec((TB, S, D_out), lambda b: (b, 0, 0))
    bias_spec = pl.BlockSpec((1, D_out), lambda b: (0, 0))
    if single_buffer_w:
        w_spec = pl.BlockSpec((D_in, D_out), lambda b: (0, 0),
                              pipeline_mode=pl.Buffered(1))
    else:
        w_spec = pl.BlockSpec((D_in, D_out), lambda b: (0, 0))

    # Scoped-VMEM limit: enough for the pipelined tiles + resident weights,
    # never below the per-chip default, never above the generation budget.
    tile_bytes = 2 * TB * S * (D_in * in_item + D_out * out_item
                               + (4 if has_mask else 0))
    vmem_limit = int(min(max(tile_bytes + weight_bytes + (4 << 20), 32 << 20),
                         vmem_budget))
    compiler_params = pltpu.CompilerParams(
        dimension_semantics=("parallel",),        # batch axis shards across TCs
        vmem_limit_bytes=vmem_limit,
    )

    # Advisory cost estimate (helps XLA schedule around the custom call).
    flops = 2 * B * S * D_in * D_out + 2 * B * D_in * D_out
    bytes_accessed = (B * S * D_in * in_item + B * S * D_out * out_item
                      + 2 * D_in * D_out * w_item + 2 * D_out * 4
                      + (B * S * 4 if has_mask else 0))
    cost = pl.CostEstimate(flops=flops, transcendentals=0,
                           bytes_accessed=bytes_accessed)

    if not has_mask:
        kernel = functools.partial(_equivariant_kernel_nomask,
                                   inv_s=1.0 / S, mm_dtype=mm_dtype)
        grid_spec = pltpu.PrefetchScalarGridSpec(
            num_scalar_prefetch=0, grid=grid,
            in_specs=[x_spec, w_spec, bias_spec, w_spec, bias_spec],
            out_specs=out_spec)
        return pl.pallas_call(
            kernel,
            out_shape=jax.ShapeDtypeStruct((B, S, D_out), out_dtype),
            grid_spec=grid_spec,
            compiler_params=compiler_params,
            cost_estimate=cost,
        )(x, w1c, b1_2d, w2c, b2_2d)

    # Masked path: only the (cheap) mask slice/cast stays in the wrapper; the
    # per-set reduction and divide are in-kernel.
    m = mask[..., 0, None].astype(jnp.float32)            # (B, S, 1)
    m_spec = pl.BlockSpec((TB, S, 1), lambda b: (b, 0, 0))
    kernel = functools.partial(_equivariant_kernel_masked, mm_dtype=mm_dtype)
    grid_spec = pltpu.PrefetchScalarGridSpec(
        num_scalar_prefetch=0, grid=grid,
        in_specs=[x_spec, m_spec, w_spec, bias_spec, w_spec, bias_spec],
        out_specs=out_spec)
    return pl.pallas_call(
        kernel,
        out_shape=jax.ShapeDtypeStruct((B, S, D_out), out_dtype),
        grid_spec=grid_spec,
        compiler_params=compiler_params,
        cost_estimate=cost,
    )(x, m, w1c, b1_2d, w2c, b2_2d)


# --------------------------------------------------------------------------- #
# Reference + self-test
# --------------------------------------------------------------------------- #
def _reference(x, w1, b1, w2, b2, mask=None):
    """Pure-JAX transcription of the PyTorch forward for verification."""
    y1 = x @ w1 + b1
    y2 = jnp.sum(x, axis=-2, keepdims=True) @ w2 + b2
    if mask is not None:
        m = mask[..., 0, None].astype(x.dtype)
        y1 = y1 * m
        y2 = y2 * m / jnp.sum(m, axis=-2, keepdims=True)
    else:
        y2 = y2 / x.shape[-2]
    return y1 + y2


if __name__ == "__main__":
    key = jax.random.PRNGKey(0)
    B, S, D_in, D_out = 2, 8, 32, 32
    (k_x, k_w1, k_b1, k_w2, k_b2, k_m, k_x2, k_m2,
     k_x3, k_m3) = jax.random.split(key, 10)

    x = jax.random.normal(k_x, (B, S, D_in), dtype=jnp.float32)

    # Deterministic nn.Linear-style init: U(-1/sqrt(in_dim), 1/sqrt(in_dim)).
    bound = 1.0 / (D_in ** 0.5)
    w1 = jax.random.uniform(k_w1, (D_in, D_out), jnp.float32, -bound, bound)
    b1 = jax.random.uniform(k_b1, (D_out,), jnp.float32, -bound, bound)
    w2 = jax.random.uniform(k_w2, (D_in, D_out), jnp.float32, -bound, bound)
    b2 = jax.random.uniform(k_b2, (D_out,), jnp.float32, -bound, bound)

    # --- mask=None path (f32) ---
    out = jax.block_until_ready(equivariant_layer(x, w1, b1, w2, b2))
    ref = _reference(x, w1, b1, w2, b2)
    assert out.shape == ref.shape
    assert jnp.allclose(out, ref, atol=1e-5, rtol=1e-5)

    # --- masked path (f32), in-kernel mask sum ---
    mask = (jax.random.uniform(k_m, (B, S, 1)) > 0.3).astype(jnp.float32)
    mask = mask.at[:, 0, :].set(1.0)   # at least one live element per set
    out_m = jax.block_until_ready(equivariant_layer(x, w1, b1, w2, b2, mask=mask))
    ref_m = _reference(x, w1, b1, w2, b2, mask=mask)
    assert jnp.allclose(out_m, ref_m, atol=1e-5, rtol=1e-5)

    # --- larger batch + explicit block_b: multi-step grid with TB batching ---
    B2 = 8
    x2 = jax.random.normal(k_x2, (B2, S, D_in), dtype=jnp.float32)
    mask2 = (jax.random.uniform(k_m2, (B2, S, 1)) > 0.3).astype(jnp.float32)
    mask2 = mask2.at[:, 0, :].set(1.0)
    out2 = jax.block_until_ready(
        equivariant_layer(x2, w1, b1, w2, b2, mask=mask2, block_b=2))
    ref2 = _reference(x2, w1, b1, w2, b2, mask=mask2)
    assert jnp.allclose(out2, ref2, atol=1e-5, rtol=1e-5)

    # --- non-divisible batch: cdiv grid with a partial boundary block ---
    B3 = 5
    x3 = jax.random.normal(k_x3, (B3, S, D_in), dtype=jnp.float32)
    mask3 = (jax.random.uniform(k_m3, (B3, S, 1)) > 0.3).astype(jnp.float32)
    mask3 = mask3.at[:, 0, :].set(1.0)
    out3 = jax.block_until_ready(
        equivariant_layer(x3, w1, b1, w2, b2, mask=mask3))
    ref3 = _reference(x3, w1, b1, w2, b2, mask=mask3)
    assert jnp.allclose(out3, ref3, atol=1e-5, rtol=1e-5)

    # --- bf16 matmul path (in-kernel cast, f32 accumulate/combine) ---
    out_bf = jax.block_until_ready(
        equivariant_layer(x, w1, b1, w2, b2, mask=mask, use_bf16_matmul=True))
    assert jnp.allclose(out_bf, ref_m, atol=5e-2, rtol=5e-2)

    print("KERNEL_OK")
</pallas_src>

<mosaic_0001>
module attributes {stable_mosaic.version = 11 : i64} {
  func.func @_equivariant_kernel_nomask(%arg0: i32, %arg1: memref<1x8x32xf32, #tpu.memory_space<vmem>>, %arg2: memref<32x32xf32, #tpu.memory_space<vmem>>, %arg3: memref<1x32xf32, #tpu.memory_space<vmem>>, %arg4: memref<32x32xf32, #tpu.memory_space<vmem>>, %arg5: memref<1x32xf32, #tpu.memory_space<vmem>>, %arg6: memref<1x8x32xf32, #tpu.memory_space<vmem>>) attributes {dimension_semantics = [#tpu.dimension_semantics<parallel>], iteration_bounds = array<i64: 2>, scalar_prefetch = 0 : i64, scratch_operands = 0 : i64, tpu.core_type = #tpu.core_type<tc>, window_params = [{transform_indices = @transform_0, window_bounds = array<i64: 1, 8, 32>}, {pipeline_mode = #tpu.pipeline_mode<synchronous>, transform_indices = @transform_1, window_bounds = array<i64: 32, 32>}, {pipeline_mode = #tpu.pipeline_mode<synchronous>, transform_indices = @transform_2, window_bounds = array<i64: 1, 32>}, {pipeline_mode = #tpu.pipeline_mode<synchronous>, transform_indices = @transform_3, window_bounds = array<i64: 32, 32>}, {pipeline_mode = #tpu.pipeline_mode<synchronous>, transform_indices = @transform_4, window_bounds = array<i64: 1, 32>}, {transform_indices = @transform_5, window_bounds = array<i64: 1, 8, 32>}]} {
    %c0 = arith.constant 0 : index
    %c0_0 = arith.constant 0 : index
    %c0_1 = arith.constant 0 : index
    %0 = vector.load %arg1[%c0, %c0_0, %c0_1] : memref<1x8x32xf32, #tpu.memory_space<vmem>>, vector<1x8x32xf32>
    %1 = vector.shape_cast %0 : vector<1x8x32xf32> to vector<8x32xf32>
    %c0_2 = arith.constant 0 : index
    %c0_3 = arith.constant 0 : index
    %2 = vector.load %arg2[%c0_2, %c0_3] : memref<32x32xf32, #tpu.memory_space<vmem>>, vector<32x32xf32>
    %cst = arith.constant dense<0.000000e+00> : vector<8x32xf32>
    %3 = tpu.matmul %1, %2, %cst {dimension_numbers = #tpu.dot_dimension_numbers<[1], [0], [0], [1], [0, 0, 1, 1], [], []>} : vector<8x32xf32>, vector<32x32xf32>, vector<8x32xf32> -> vector<8x32xf32>
    %c0_4 = arith.constant 0 : index
    %c0_5 = arith.constant 0 : index
    %4 = vector.load %arg3[%c0_4, %c0_5] : memref<1x32xf32, #tpu.memory_space<vmem>>, vector<1x32xf32>
    %5 = vector.broadcast %4 : vector<1x32xf32> to vector<8x32xf32>
    %6 = arith.addf %3, %5 : vector<8x32xf32>
    %7 = vector.shape_cast %6 : vector<8x32xf32> to vector<1x8x32xf32>
    %cst_6 = arith.constant dense<0.000000e+00> : vector<1x32xf32>
    %8 = vector.multi_reduction <add>, %0, %cst_6 [1] : vector<1x8x32xf32> to vector<1x32xf32>
    %c0_7 = arith.constant 0 : index
    %c0_8 = arith.constant 0 : index
    %9 = vector.load %arg4[%c0_7, %c0_8] : memref<32x32xf32, #tpu.memory_space<vmem>>, vector<32x32xf32>
    %cst_9 = arith.constant dense<0.000000e+00> : vector<1x32xf32>
    %10 = tpu.matmul %8, %9, %cst_9 {dimension_numbers = #tpu.dot_dimension_numbers<[1], [0], [0], [1], [0, 0, 1, 1], [], []>} : vector<1x32xf32>, vector<32x32xf32>, vector<1x32xf32> -> vector<1x32xf32>
    %c0_10 = arith.constant 0 : index
    %c0_11 = arith.constant 0 : index
    %11 = vector.load %arg5[%c0_10, %c0_11] : memref<1x32xf32, #tpu.memory_space<vmem>>, vector<1x32xf32>
    %12 = arith.addf %10, %11 : vector<1x32xf32>
    %cst_12 = arith.constant 1.250000e-01 : f32
    %13 = vector.broadcast %cst_12 : f32 to vector<1x32xf32>
    %14 = arith.mulf %12, %13 : vector<1x32xf32>
    %15 = vector.shape_cast %14 : vector<1x32xf32> to vector<1x1x32xf32>
    %16 = vector.broadcast %15 : vector<1x1x32xf32> to vector<1x8x32xf32>
    %17 = arith.addf %7, %16 : vector<1x8x32xf32>
    %c0_13 = arith.constant 0 : index
    %c0_14 = arith.constant 0 : index
    %c0_15 = arith.constant 0 : index
    %18 = vector.load %arg6[%c0_13, %c0_14, %c0_15] : memref<1x8x32xf32, #tpu.memory_space<vmem>>, vector<1x8x32xf32>
    tpu.vector_store %arg6[%c0_13, %c0_14, %c0_15], %17 {strides = array<i32>} : memref<1x8x32xf32, #tpu.memory_space<vmem>>, vector<1x8x32xf32>,
    return
  }
  func.func @transform_0(%arg0: i32) -> (i32, i32, i32) {
    %c0_i32 = arith.constant 0 : i32
    %c0_i32_0 = arith.constant 0 : i32
    %c0_i32_1 = arith.constant 0 : i32
    return %arg0, %c0_i32, %c0_i32_0 : i32, i32, i32
  }
  func.func @transform_1(%arg0: i32) -> (i32, i32) {
    %c0_i32 = arith.constant 0 : i32
    %c0_i32_0 = arith.constant 0 : i32
    %c0_i32_1 = arith.constant 0 : i32
    return %c0_i32, %c0_i32_0 : i32, i32
  }
  func.func @transform_2(%arg0: i32) -> (i32, i32) {
    %c0_i32 = arith.constant 0 : i32
    %c0_i32_0 = arith.constant 0 : i32
    %c0_i32_1 = arith.constant 0 : i32
    return %c0_i32, %c0_i32_0 : i32, i32
  }
  func.func @transform_3(%arg0: i32) -> (i32, i32) {
    %c0_i32 = arith.constant 0 : i32
    %c0_i32_0 = arith.constant 0 : i32
    %c0_i32_1 = arith.constant 0 : i32
    return %c0_i32, %c0_i32_0 : i32, i32
  }
  func.func @transform_4(%arg0: i32) -> (i32, i32) {
    %c0_i32 = arith.constant 0 : i32
    %c0_i32_0 = arith.constant 0 : i32
    %c0_i32_1 = arith.constant 0 : i32
    return %c0_i32, %c0_i32_0 : i32, i32
  }
  func.func @transform_5(%arg0: i32) -> (i32, i32, i32) {
    %c0_i32 = arith.constant 0 : i32
    %c0_i32_0 = arith.constant 0 : i32
    %c0_i32_1 = arith.constant 0 : i32
    return %arg0, %c0_i32, %c0_i32_0 : i32, i32, i32
  }
}

</mosaic_0001>

<llo_original>
// kernel: tpu_custom_call.1
$region0: #{tpu_custom_call.1}
  #allocation0 [shape = 'u32[]', space=smem, size = 0x4, offset = 0x4, fixed_abs, tag = 'smem constant byte address 0x4 - core index']
  #allocation1 [shape = 'u32[72,128]{1,0:T(1,128)}', space=vmem, size = 0x9000, scoped, tag = 'internal scratch']
  %s0 = inlined_call_operand.hbm [shape: f32[2,8,32], index: 0, kind: input, shape index: {}]
  %s1 = inlined_call_operand.hbm [shape: f32[32,32], index: 1, kind: input, shape index: {}]
  %s2 = inlined_call_operand.vmem [shape: f32[1,32], index: 2, kind: input, shape index: {}]
  %s3 = inlined_call_operand.hbm [shape: f32[32,32], index: 3, kind: input, shape index: {}]
  %s4 = inlined_call_operand.vmem [shape: f32[1,32], index: 4, kind: input, shape index: {}]
  %s5 = inlined_call_operand.hbm [shape: f32[2,8,32], index: 5, kind: output, shape index: {}]
  %s6 = sld [smem:[#allocation0]]
  $region65: #{tpu_custom_call.1} parent=0
    _
  %s8 = ssub.s32 1, %s6
  %s9 = scalar_select 0, %s8, %s6
  $region1: #{tpu_custom_call.1} parent=0
    #allocation2 [shape = 'u8[8192]{0}', space=vmem, size = 0x2000, scoped, tag = 'input window, operand 0']
    #allocation3 [shape = 's32[2]{0}', space=sflag, size = 0x8, scoped, tag = 'scoped memory for tpu_custom_call.1']
    #allocation4 [shape = 's32[2]{0}', space=sflag, size = 0x8, scoped, tag = 'scoped memory for tpu_custom_call.1']
    #allocation5 [shape = 'u8[16384]{0}', space=vmem, size = 0x4000, scoped, tag = 'input window, operand 1, single buffered']
    #allocation6 [shape = 's32[1]{0}', space=sflag, size = 0x4, scoped, tag = 'scoped memory for tpu_custom_call.1']
    #allocation7 [shape = 'u8[16384]{0}', space=vmem, size = 0x4000, scoped, tag = 'input window, operand 3, single buffered']
    #allocation8 [shape = 'u8[8192]{0}', space=vmem, size = 0x2000, scoped, tag = 'output window, operand 0']
    %10 = vsyncpa [#allocation3], 0
    %s11 = scalar_lea.sflag [#allocation3], 1
    %12 = vsyncpa %s11, 0
    %13 = vsyncpa [#allocation6], 0
    %14 = vsyncpa [#allocation4], 0
    %s15 = scalar_lea.sflag [#allocation4], 1
    %16 = vsyncpa %s15, 0
    loop: start=0, step=1, limit=4
    $region2: #{tpu_custom_call.1} parent=1 // loop_pre_header
      _
    $region3: #{tpu_custom_call.1} parent=1 // loop_header
      %s18 = sphi 0, %s22
      %p19 = scmp.ge.s32.totalorder %s18, 4
      %s28 = sphi 0, %s30
      %s31 = sphi 0, %s28
      %s32 = sphi 0, %s31
      %s48 = sphi 0, %s32
      %s52 = sphi 0, %s52
      %s54 = sphi 0, %s52
      %s55 = sphi 0, %s54
      %s69 = sphi 0, %s55
      %s73 = sphi 0, %s73
      %s75 = sphi 0, %s73
      %s76 = sphi 0, %s75
      %s90 = sphi 0, %s76
      %s94 = sphi 0, %s94
      %s96 = sphi 0, %s94
      %s97 = sphi 0, %s96
      %s111 = sphi 0, %s97
      %s115 = sphi 0, %s115
      %s117 = sphi 0, %s115
      %s118 = sphi 0, %s117
      %s132 = sphi 0, %s118
      %s138 = sphi 0, %s140
      %s141 = sphi 0, %s138
      %s142 = sphi 0, %s141
      %s158 = sphi 0, %s142
    $region4: #{tpu_custom_call.1} parent=1 // loop_header_branch
      %21 = sbr.rel (%p19) target = $region8
    $region5: #{tpu_custom_call.1} parent=1 // loop_body
      %s23 = ssub.s32 %s18, 1
      %s24 = ssub.s32 %s18, 2
      %s25 = sadd.s32 %s18, 1
      %s26 = ssub.s32 %s18, %s25
      %p27 = scmp.eq.s32.totalorder %s26, 0
      %s29 = sadd.s32 %s28, 1
      %s30 = scalar_select %p27, %s28, %s29
      %p33 = pneg %p27
      %p34 = scmp.eq.s32.totalorder %s18, 1
      %p35 = por %p33, %p34
      %p36 = scmp.ne.s32.totalorder %s28, %s31
      %p37 = scmp.eq.s32.totalorder %s18, 0
      %p38 = por %p36, %p37
      %p39 = scmp.ne.s32.totalorder %s28, %s31
      %p40 = scmp.eq.s32.totalorder %s23, 1
      %p41 = por %p39, %p40
      %p42 = scmp.ne.s32.totalorder %s31, %s32
      %p43 = scmp.eq.s32.totalorder %s23, 0
      %p44 = por %p42, %p43
      %p45 = scmp.ne.s32.totalorder %s31, %s32
      %p46 = scmp.eq.s32.totalorder %s24, 1
      %p47 = por %p45, %p46
      %p49 = scmp.ne.s32.totalorder %s32, %s48
      %p50 = scmp.eq.s32.totalorder %s24, 0
      %p51 = por %p49, %p50
      %s53 = sadd.s32 %s52, 1
      %p56 = scmp.eq.s32.totalorder %s18, 1
      %p57 = scmp.ne.s32.totalorder %s52, %s54
      %p58 = scmp.eq.s32.totalorder %s18, 0
      %p59 = por %p57, %p58
      %p60 = scmp.ne.s32.totalorder %s52, %s54
      %p61 = scmp.eq.s32.totalorder %s23, 1
      %p62 = por %p60, %p61
      %p63 = scmp.ne.s32.totalorder %s54, %s55
      %p64 = scmp.eq.s32.totalorder %s23, 0
      %p65 = por %p63, %p64
      %p66 = scmp.ne.s32.totalorder %s54, %s55
      %p67 = scmp.eq.s32.totalorder %s24, 1
      %p68 = por %p66, %p67
      %p70 = scmp.ne.s32.totalorder %s55, %s69
      %p71 = scmp.eq.s32.totalorder %s24, 0
      %p72 = por %p70, %p71
      %s74 = sadd.s32 %s73, 1
      %p77 = scmp.eq.s32.totalorder %s18, 1
      %p78 = scmp.ne.s32.totalorder %s73, %s75
      %p79 = scmp.eq.s32.totalorder %s18, 0
      %p80 = por %p78, %p79
      %p81 = scmp.ne.s32.totalorder %s73, %s75
      %p82 = scmp.eq.s32.totalorder %s23, 1
      %p83 = por %p81, %p82
      %p84 = scmp.ne.s32.totalorder %s75, %s76
      %p85 = scmp.eq.s32.totalorder %s23, 0
      %p86 = por %p84, %p85
      %p87 = scmp.ne.s32.totalorder %s75, %s76
      %p88 = scmp.eq.s32.totalorder %s24, 1
      %p89 = por %p87, %p88
      %p91 = scmp.ne.s32.totalorder %s76, %s90
      %p92 = scmp.eq.s32.totalorder %s24, 0
      %p93 = por %p91, %p92
      %s95 = sadd.s32 %s94, 1
      %p98 = scmp.eq.s32.totalorder %s18, 1
      %p99 = scmp.ne.s32.totalorder %s94, %s96
      %p100 = scmp.eq.s32.totalorder %s18, 0
      %p101 = por %p99, %p100
      %p102 = scmp.ne.s32.totalorder %s94, %s96
      %p103 = scmp.eq.s32.totalorder %s23, 1
      %p104 = por %p102, %p103
      %p105 = scmp.ne.s32.totalorder %s96, %s97
      %p106 = scmp.eq.s32.totalorder %s23, 0
      %p107 = por %p105, %p106
      %p108 = scmp.ne.s32.totalorder %s96, %s97
      %p109 = scmp.eq.s32.totalorder %s24, 1
      %p110 = por %p108, %p109
      %p112 = scmp.ne.s32.totalorder %s97, %s111
      %p113 = scmp.eq.s32.totalorder %s24, 0
      %p114 = por %p112, %p113
      %s116 = sadd.s32 %s115, 1
      %p119 = scmp.eq.s32.totalorder %s18, 1
      %p120 = scmp.ne.s32.totalorder %s115, %s117
      %p121 = scmp.eq.s32.totalorder %s18, 0
      %p122 = por %p120, %p121
      %p123 = scmp.ne.s32.totalorder %s115, %s117
      %p124 = scmp.eq.s32.totalorder %s23, 1
      %p125 = por %p123, %p124
      %p126 = scmp.ne.s32.totalorder %s117, %s118
      %p127 = scmp.eq.s32.totalorder %s23, 0
      %p128 = por %p126, %p127
      %p129 = scmp.ne.s32.totalorder %s117, %s118
      %p130 = scmp.eq.s32.totalorder %s24, 1
      %p131 = por %p129, %p130
      %p133 = scmp.ne.s32.totalorder %s118, %s132
      %p134 = scmp.eq.s32.totalorder %s24, 0
      %p135 = por %p133, %p134
      %s136 = ssub.s32 %s18, %s25
      %p137 = scmp.eq.s32.totalorder %s136, 0
      %s139 = sadd.s32 %s138, 1
      %s140 = scalar_select %p137, %s138, %s139
      %p143 = pneg %p137
      %p144 = scmp.eq.s32.totalorder %s18, 1
      %p145 = por %p143, %p144
      %p146 = scmp.ne.s32.totalorder %s138, %s141
      %p147 = scmp.eq.s32.totalorder %s18, 0
      %p148 = por %p146, %p147
      %p149 = scmp.ne.s32.totalorder %s138, %s141
      %p150 = scmp.eq.s32.totalorder %s23, 1
      %p151 = por %p149, %p150
      %p152 = scmp.ne.s32.totalorder %s141, %s142
      %p153 = scmp.eq.s32.totalorder %s23, 0
      %p154 = por %p152, %p153
      %p155 = scmp.ne.s32.totalorder %s141, %s142
      %p156 = scmp.eq.s32.totalorder %s24, 1
      %p157 = por %p155, %p156
      %p159 = scmp.ne.s32.totalorder %s142, %s158
      %p160 = scmp.eq.s32.totalorder %s24, 0
      %p161 = por %p159, %p160
      %p162 = scmp.le.s32.totalorder 1, %s18
      %p163 = scmp.lt.s32.totalorder %s18, 3
      %p164 = pnand %p162, %p163
      %p165 = pneg %p164
      // Predicated region
      $region9: #{tpu_custom_call.1} parent=5 // pred_check
        _
      $region10: #{tpu_custom_call.1} parent=5 // pred_check_branch
        %167 = sbr.rel (%p164) target = $region12
      $region11: #{tpu_custom_call.1} parent=5 // pred_region
        %s168 = ssub.s32 %s18, 1
        // Predicated region
        $region13: #{tpu_custom_call.1} parent=11 // pred_check
          %p169 = pneg %p65
        $region14: #{tpu_custom_call.1} parent=11 // pred_check_branch
          %171 = sbr.rel (%p169) target = $region16
        $region15: #{tpu_custom_call.1} parent=11 // pred_region
          %173 = vsyncadd [#allocation6], 0
          %s174 = sshll.u32 %s1, 4
          %s175 = int_to_ptr.hbm [resolvable:$true] %s174
          %s176 = sshll.u32 [#allocation5], 4
          %s177 = int_to_ptr.vmem [resolvable:$true] %s176
          %182 = dma.hbm_to_vmem [thread:$0]  %s175, 512, %s177, [#allocation6], 128, 128, 8
        $region16: #{tpu_custom_call.1} parent=11 // pred_fallthru
          _
        // Predicated region
        $region17: #{tpu_custom_call.1} parent=11 // pred_check
          %p183 = pneg %p86
        $region18: #{tpu_custom_call.1} parent=11 // pred_check_branch
          %185 = sbr.rel (%p183) target = $region20
        $region19: #{tpu_custom_call.1} parent=11 // pred_region
          _
        $region20: #{tpu_custom_call.1} parent=11 // pred_fallthru
          _
        // Predicated region
        $region21: #{tpu_custom_call.1} parent=11 // pred_check
          %p186 = pneg %p107
        $region22: #{tpu_custom_call.1} parent=11 // pred_check_branch
          %188 = sbr.rel (%p186) target = $region24
        $region23: #{tpu_custom_call.1} parent=11 // pred_region
          %190 = vsyncadd [#allocation6], 0
          %s191 = sshll.u32 %s3, 4
          %s192 = int_to_ptr.hbm [resolvable:$true] %s191
          %s193 = sshll.u32 [#allocation7], 4
          %s194 = int_to_ptr.vmem [resolvable:$true] %s193
          %199 = dma.hbm_to_vmem [thread:$0]  %s192, 512, %s194, [#allocation6], 128, 128, 8
        $region24: #{tpu_custom_call.1} parent=11 // pred_fallthru
          _
        // Predicated region
        $region25: #{tpu_custom_call.1} parent=11 // pred_check
          %p200 = pneg %p128
        $region26: #{tpu_custom_call.1} parent=11 // pred_check_branch
          %202 = sbr.rel (%p200) target = $region28
        $region27: #{tpu_custom_call.1} parent=11 // pred_region
          _
        $region28: #{tpu_custom_call.1} parent=11 // pred_fallthru
          _
      $region12: #{tpu_custom_call.1} parent=5 // pred_fallthru
        _
      %p203 = scmp.lt.s32.totalorder %s18, 2
      // Predicated region
      $region29: #{tpu_custom_call.1} parent=5 // pred_check
        %p204 = pneg %p203
      $region30: #{tpu_custom_call.1} parent=5 // pred_check_branch
        %206 = sbr.rel (%p204) target = $region32
      $region31: #{tpu_custom_call.1} parent=5 // pred_region
        // Predicated region
        $region33: #{tpu_custom_call.1} parent=31 // pred_check
          %p207 = pneg %p38
        $region34: #{tpu_custom_call.1} parent=31 // pred_check_branch
          %209 = sbr.rel (%p207) target = $region36
        $region35: #{tpu_custom_call.1} parent=31 // pred_region
          %s210 = sand.u32 %s28, 1
          %s211 = scalar_lea.sflag [#allocation3], %s210
          %s212 = sand.u32 %s28, 1
          %s213 = smul.addr %s212, 8
          %s214 = scalar_lea.vmem [#allocation2], %s213
          %216 = vsyncadd %s211, 0
          %s217 = smul.addr %s18, 8
          %s218 = scalar_lea.hbm %s0, %s217
          %s220 = sshll.u32 %s218, 4
          %s221 = int_to_ptr.hbm [resolvable:$true] %s220
          %s222 = sshll.u32 %s214, 4
          %s223 = int_to_ptr.vmem [resolvable:$true] %s222
          %225 = dma.hbm_to_vmem [thread:$0]  %s221, 128, %s223, %s211
        $region36: #{tpu_custom_call.1} parent=31 // pred_fallthru
          _
      $region32: #{tpu_custom_call.1} parent=5 // pred_fallthru
        _
      %p226 = scmp.le.s32.totalorder 1, %s18
      %p227 = scmp.lt.s32.totalorder %s18, 3
      %p228 = pnand %p226, %p227
      %p229 = pneg %p228
      // Predicated region
      $region37: #{tpu_custom_call.1} parent=5 // pred_check
        _
      $region38: #{tpu_custom_call.1} parent=5 // pred_check_branch
        %231 = sbr.rel (%p228) target = $region40
      $region39: #{tpu_custom_call.1} parent=5 // pred_region
        %s232 = ssub.s32 %s18, 1
        %s233 = sand.u32 %s31, 1
        %s234 = scalar_lea.sflag [#allocation3], %s233
        %s235 = sand.u32 %s31, 1
        %s236 = smul.addr %s235, 8
        %s237 = scalar_lea.vmem [#allocation2], %s236
        // Predicated region
        $region41: #{tpu_custom_call.1} parent=39 // pred_check
          %p238 = pneg %p44
        $region42: #{tpu_custom_call.1} parent=39 // pred_check_branch
          %240 = sbr.rel (%p238) target = $region44
        $region43: #{tpu_custom_call.1} parent=39 // pred_region
          %242 = dma.done %s234, 128
        $region44: #{tpu_custom_call.1} parent=39 // pred_fallthru
          _
        // Predicated region
        $region45: #{tpu_custom_call.1} parent=39 // pred_check
          %p243 = pneg %p65
        $region46: #{tpu_custom_call.1} parent=39 // pred_check_branch
          %245 = sbr.rel (%p243) target = $region48
        $region47: #{tpu_custom_call.1} parent=39 // pred_region
          %247 = dma.done [#allocation6], 512
        $region48: #{tpu_custom_call.1} parent=39 // pred_fallthru
          _
        // Predicated region
        $region49: #{tpu_custom_call.1} parent=39 // pred_check
          %p248 = pneg %p107
        $region50: #{tpu_custom_call.1} parent=39 // pred_check_branch
          %250 = sbr.rel (%p248) target = $region52
        $region51: #{tpu_custom_call.1} parent=39 // pred_region
          %252 = dma.done [#allocation6], 512
        $region52: #{tpu_custom_call.1} parent=39 // pred_fallthru
          _
        %s253 = sand.u32 %s31, 1
        %s254 = scalar_lea.sflag [#allocation3], %s253
        %s255 = sand.u32 %s31, 1
        %s256 = smul.addr %s255, 8
        %s257 = scalar_lea.vmem [#allocation2], %s256
        %p258 = pneg %p44
        %p259 = pneg %p41
        %p260 = pneg %p65
        %p261 = pneg %p62
        %p262 = pneg %p86
        %p263 = pneg %p83
        %p264 = pneg %p107
        %p265 = pneg %p104
        %p266 = pneg %p128
        %p267 = pneg %p125
        %p268 = pneg %p154
        %p269 = pneg %p151
        %s270 = sand.u32 %s141, 1
        %s271 = scalar_lea.sflag [#allocation4], %s270
        %s272 = sand.u32 %s141, 1
        %s273 = smul.addr %s272, 8
        %s274 = scalar_lea.vmem [#allocation8], %s273
        %v275 = vld [vmem:[%s237] sm:$0xff]
        %v276 = vld [vmem:[#allocation5] sm:$0xff]
        %v277 = vld [vmem:[#allocation5 + $0x8] sm:$0xff]
        %v278 = vld [vmem:[#allocation5 + $0x10] sm:$0xff]
        %v279 = vld [vmem:[#allocation5 + $0x18] sm:$0xff]
        %v280 = vld [vmem:[%s2] sm:$0x1]
        %v282 = vperm.slane %v280, 0
        %vm284 = vcmask 261120
        %v286 = vsel %vm284, %v275, 0
        %288 = vmatpush.msra.mxu0 0.0
        %289 = vmatpush.msra.mxu0 0.0
        %290 = vmatpush.msra.mxu0 0.0
        %291 = vmatpush.msra.mxu0 0.0
        %292 = vmatpush.msra.mxu0 0.0
        %293 = vmatpush.msra.mxu0 0.0
        %294 = vmatpush.msra.mxu0 0.0
        %295 = vmatpush.msra.mxu0 0.0
        %296 = vmatpush.msra.mxu0 0.0
        %297 = vmatpush.msra.mxu0 0.0
        %298 = vmatpush.msra.mxu0 0.0
        %299 = vmatpush.msra.mxu0 0.0
        %300 = vmatpush.msra.mxu0 %v279
        %301 = vmatpush.msra.mxu0 %v278
        %302 = vmatpush.msra.mxu0 %v277
        %303 = vmatpush.msra.mxu0 %v276
        %304 = vmatmul.f32.gmra.mxu0 %v286
        %v305 = vpop.f32.mrf.mxu0
        %v306 = vadd.f32 %v282, %v305
        %307 = vdwg.mxu0
        %v308 = vsel %vm284, %v275, 0.0
        %v309 = vrot.slane %v308, 4
        %v310 = vadd.f32 %v308, %v309
        %v311 = vrot.slane %v310, 2
        %v312 = vadd.f32 %v310, %v311
        %v313 = vrot.slane %v312, 1
        %v314 = vadd.f32 %v312, %v313
        %v315 = vld [vmem:[#allocation7] sm:$0xff]
        %v316 = vld [vmem:[#allocation7 + $0x8] sm:$0xff]
        %v317 = vld [vmem:[#allocation7 + $0x10] sm:$0xff]
        %v318 = vld [vmem:[#allocation7 + $0x18] sm:$0xff]
        %v319 = vld [vmem:[%s4] sm:$0x1]
        %v321 = vsel %vm284, %v314, 0
        %323 = vmatpush.msra.mxu0 0.0
        %324 = vmatpush.msra.mxu0 0.0
        %325 = vmatpush.msra.mxu0 0.0
        %326 = vmatpush.msra.mxu0 0.0
        %327 = vmatpush.msra.mxu0 0.0
        %328 = vmatpush.msra.mxu0 0.0
        %329 = vmatpush.msra.mxu0 0.0
        %330 = vmatpush.msra.mxu0 0.0
        %331 = vmatpush.msra.mxu0 0.0
        %332 = vmatpush.msra.mxu0 0.0
        %333 = vmatpush.msra.mxu0 0.0
        %334 = vmatpush.msra.mxu0 0.0
        %335 = vmatpush.msra.mxu0 %v318
        %336 = vmatpush.msra.mxu0 %v317
        %337 = vmatpush.msra.mxu0 %v316
        %338 = vmatpush.msra.mxu0 %v315
        %339 = vmatmul.f32.gmra.mxu0 %v321
        %v340 = vpop.f32.mrf.mxu0
        %v341 = vadd.f32 %v319, %v340
        %342 = vdwg.mxu0
        %v343 = vmul.f32 %v341, 0.125
        %v344 = vperm.slane %v343, 0
        %v345 = vadd.f32 %v306, %v344
        %346 = vst.msk [vmem:[%s274] sm:$0xff] %vm284, %v345
        %s347 = sand.u32 %s141, 1
        %s348 = scalar_lea.sflag [#allocation4], %s347
        %s349 = sand.u32 %s141, 1
        %s350 = smul.addr %s349, 8
        %s351 = scalar_lea.vmem [#allocation8], %s350
        // Predicated region
        $region53: #{tpu_custom_call.1} parent=39 // pred_check
          %p352 = pneg %p151
        $region54: #{tpu_custom_call.1} parent=39 // pred_check_branch
          %354 = sbr.rel (%p352) target = $region56
        $region55: #{tpu_custom_call.1} parent=39 // pred_region
          %356 = vsyncadd %s348, 0
          %s357 = smul.addr %s23, 8
          %s358 = scalar_lea.hbm %s5, %s357
          %s360 = sshll.u32 %s351, 4
          %s361 = int_to_ptr.vmem [resolvable:$true] %s360
          %s362 = sshll.u32 %s358, 4
          %s363 = int_to_ptr.hbm [resolvable:$true] %s362
          %365 = dma.vmem_to_hbm [thread:$0]  %s361, 128, %s363, %s348
        $region56: #{tpu_custom_call.1} parent=39 // pred_fallthru
          _
      $region40: #{tpu_custom_call.1} parent=5 // pred_fallthru
        _
      %p366 = scmp.le.s32.totalorder 2, %s18
      // Predicated region
      $region57: #{tpu_custom_call.1} parent=5 // pred_check
        %p367 = pneg %p366
      $region58: #{tpu_custom_call.1} parent=5 // pred_check_branch
        %369 = sbr.rel (%p367) target = $region60
      $region59: #{tpu_custom_call.1} parent=5 // pred_region
        %s370 = ssub.s32 %s18, 2
        // Predicated region
        $region61: #{tpu_custom_call.1} parent=59 // pred_check
          %p371 = pneg %p157
        $region62: #{tpu_custom_call.1} parent=59 // pred_check_branch
          %373 = sbr.rel (%p371) target = $region64
        $region63: #{tpu_custom_call.1} parent=59 // pred_region
          %s374 = sand.u32 %s142, 1
          %s375 = scalar_lea.sflag [#allocation4], %s374
          %s376 = sand.u32 %s142, 1
          %s377 = smul.addr %s376, 8
          %s378 = scalar_lea.vmem [#allocation8], %s377
          %380 = dma.done %s375, 128
        $region64: #{tpu_custom_call.1} parent=59 // pred_fallthru
          _
      $region60: #{tpu_custom_call.1} parent=5 // pred_fallthru
        _
    $region6: #{tpu_custom_call.1} parent=1 // loop_footer
      %s22 = sadd.s32 1, %s18
    $region7: #{tpu_custom_call.1} parent=1 // loop_footer_branch
      %17 = sbr.rel target = $region3
    $region8: #{tpu_custom_call.1} parent=1 // loop_exit
      _
    %381 = vsyncpa [#allocation3], 1
    %s382 = scalar_lea.sflag [#allocation3], 1
    %383 = vsyncpa %s382, 1
    %384 = vsyncpa [#allocation6], 1
    %385 = vsyncpa [#allocation4], 1
    %s386 = scalar_lea.sflag [#allocation4], 1
    %387 = vsyncpa %s386, 1

</llo_original>
